<compile_context>
chip_gen: v5e
topology: v5e:2x2
jax: 0.10.0
libtpu: 0.0.40
codegen_flags: <defaults>
</compile_context>

<pallas_src>
import functools

import jax
import jax.numpy as jnp
from jax.experimental import pallas as pl
from jax.experimental.pallas import tpu as pltpu


def _mlp_kernel(x_ref, w1t_ref, b1_ref, w2t_ref, b2_ref,
                w3t_ref, b3_ref, w4t_ref, b4_ref, o_ref):
    # x tile streamed straight from HBM as f32; cast to bf16 here (in-kernel),
    # not in the wrapper, so HBM sees exactly one read of x.
    x = x_ref[...].astype(jnp.bfloat16)                               # (TB, F)

    # Layer 1: W1^T (32, F) contracted with x (TB, F) over F -> (32, TB).
    # Batch lands in the lane dim, fully dense from here on.
    h = jax.lax.dot_general(
        w1t_ref[...], x,
        dimension_numbers=(((1,), (1,)), ((), ())),
        preferred_element_type=jnp.float32)                           # (32, TB)
    h = jnp.maximum(h + b1_ref[...], 0.0)                             # bias (32,1) lane-bcast

    # Layer 2: (64, 32) @ (32, TB) -> (64, TB)
    h = jnp.dot(w2t_ref[...], h.astype(jnp.bfloat16),
                preferred_element_type=jnp.float32)
    h = jnp.maximum(h + b2_ref[...], 0.0)

    # Layer 3: (32, 64) @ (64, TB) -> (32, TB)
    h = jnp.dot(w3t_ref[...], h.astype(jnp.bfloat16),
                preferred_element_type=jnp.float32)
    h = jnp.maximum(h + b3_ref[...], 0.0)

    # Output layer: (1, 32) @ (32, TB) -> (1, TB), already lane-dense.
    z = jnp.dot(w4t_ref[...], h.astype(jnp.bfloat16),
                preferred_element_type=jnp.float32)
    z = z + b4_ref[0, 0]                                              # scalar bias from SMEM

    o_ref[...] = jax.nn.sigmoid(z).astype(o_ref.dtype)                # (1, TB)


def _pick_block_b(B, cap):
    """Pick a batch tile (multiple of 128) giving the smallest grid with >= 2
    steps when B >= 256 (keeps both v7x TensorCores busy) while never exceeding
    `cap` (amortises per-grid-step overhead)."""
    b128 = ((B + 127) // 128) * 128
    if b128 <= 128:
        return 128
    half = ((b128 // 2 + 127) // 128) * 128
    return max(128, min(cap, half))


@functools.partial(jax.jit, static_argnames=("block_b",))
def simple_ffn_forward(x, params, block_b=4096):
    """x: (B, in_features) float32 -> (B, 1) float32 (PyTorch Linear semantics)."""
    w1, b1, w2, b2, w3, b3, w4, b4 = params
    B, F = x.shape

    tb = _pick_block_b(B, block_b)
    nb = pl.cdiv(B, tb)

    # Transposed (fan_out, fan_in) bf16 weights; these are tiny fixed-size
    # constants, so the wrapper-side transpose/cast is negligible (unlike x).
    w1t = jnp.transpose(w1).astype(jnp.bfloat16)      # (32, F)
    w2t = jnp.transpose(w2).astype(jnp.bfloat16)      # (64, 32)
    w3t = jnp.transpose(w3).astype(jnp.bfloat16)      # (32, 64)
    w4t = jnp.transpose(w4).astype(jnp.bfloat16)      # (1, 32)
    b1c = jnp.transpose(b1)                           # (32, 1) f32
    b2c = jnp.transpose(b2)                           # (64, 1) f32
    b3c = jnp.transpose(b3)                           # (32, 1) f32
    b4s = b4.reshape(1, 1)                            # (1, 1) f32 -> SMEM scalar

    full = lambda a: pl.BlockSpec(a.shape, lambda i: (0, 0))

    out = pl.pallas_call(
        _mlp_kernel,
        out_shape=jax.ShapeDtypeStruct((1, B), jnp.float32),
        grid_spec=pltpu.PrefetchScalarGridSpec(
            num_scalar_prefetch=0,
            grid=(nb,),
            in_specs=[
                pl.BlockSpec((tb, F), lambda i: (i, 0)),      # x (f32) streams
                full(w1t), full(b1c),
                full(w2t), full(b2c),
                full(w3t), full(b3c),
                full(w4t),
                pl.BlockSpec(memory_space=pltpu.MemorySpace.SMEM),  # scalar b4
            ],
            out_specs=pl.BlockSpec((1, tb), lambda i: (0, i)),
        ),
        compiler_params=pltpu.CompilerParams(
            dimension_semantics=("parallel",)),
    )(x, w1t, b1c, w2t, b2c, w3t, b3c, w4t, b4s)

    return out.reshape(B, 1)


def init_params(key, in_features):
    """PyTorch-Linear-style init: U(-1/sqrt(fan_in), 1/sqrt(fan_in)).

    Weights are stored as (fan_in, fan_out) so the reference does x @ W + b
    (== x @ W_torch.T + b); biases are (1, fan_out)."""
    dims = [(in_features, 32), (32, 64), (64, 32), (32, 1)]
    params = []
    for (fan_in, fan_out) in dims:
        key, kw, kb = jax.random.split(key, 3)
        bound = 1.0 / (fan_in ** 0.5)
        w = jax.random.uniform(kw, (fan_in, fan_out), jnp.float32, -bound, bound)
        b = jax.random.uniform(kb, (1, fan_out), jnp.float32, -bound, bound)
        params += [w, b]
    return tuple(params)


def reference_forward(x, params):
    w1, b1, w2, b2, w3, b3, w4, b4 = params
    h = jnp.maximum(x @ w1 + b1, 0.0)
    h = jnp.maximum(h @ w2 + b2, 0.0)
    h = jnp.maximum(h @ w3 + b3, 0.0)
    return jax.nn.sigmoid(h @ w4 + b4)


if __name__ == "__main__":
    key = jax.random.PRNGKey(0)
    in_features = 16

    k_x, k_x2, k_p = jax.random.split(key, 3)
    params = init_params(k_p, in_features)

    # Full-tile path: B=1024 -> block_b=512, 2 "parallel" grid steps
    # (keeps both v7x TensorCores busy; single-TC chips just loop).
    x = jax.random.normal(k_x, (1024, in_features), dtype=jnp.float32)
    out = jax.block_until_ready(simple_ffn_forward(x, params))
    ref = reference_forward(x, params)
    assert out.shape == (1024, 1), out.shape
    assert jnp.allclose(out, ref, atol=2e-2), float(jnp.max(jnp.abs(out - ref)))

    # Partial-tile path: B=200 -> block_b=128, 2 steps, ragged last tile.
    x2 = jax.random.normal(k_x2, (200, in_features), dtype=jnp.float32)
    out2 = jax.block_until_ready(simple_ffn_forward(x2, params))
    ref2 = reference_forward(x2, params)
    assert out2.shape == (200, 1), out2.shape
    assert jnp.allclose(out2, ref2, atol=2e-2), float(jnp.max(jnp.abs(out2 - ref2)))

    print("KERNEL_OK")
</pallas_src>

<mosaic_0001>
module attributes {stable_mosaic.version = 11 : i64} {
  func.func @_mlp_kernel(%arg0: i32, %arg1: memref<512x16xf32, #tpu.memory_space<vmem>>, %arg2: memref<32x16xbf16, #tpu.memory_space<vmem>>, %arg3: memref<32x1xf32, #tpu.memory_space<vmem>>, %arg4: memref<64x32xbf16, #tpu.memory_space<vmem>>, %arg5: memref<64x1xf32, #tpu.memory_space<vmem>>, %arg6: memref<32x64xbf16, #tpu.memory_space<vmem>>, %arg7: memref<32x1xf32, #tpu.memory_space<vmem>>, %arg8: memref<1x32xbf16, #tpu.memory_space<vmem>>, %arg9: memref<1x1xf32, #tpu.memory_space<smem>>, %arg10: memref<1x512xf32, #tpu.memory_space<vmem>>) attributes {dimension_semantics = [#tpu.dimension_semantics<parallel>], iteration_bounds = array<i64: 2>, scalar_prefetch = 0 : i64, scratch_operands = 0 : i64, tpu.core_type = #tpu.core_type<tc>, window_params = [{transform_indices = @transform_0, window_bounds = array<i64: 512, 16>}, {pipeline_mode = #tpu.pipeline_mode<synchronous>, transform_indices = @transform_1, window_bounds = array<i64: 32, 16>}, {pipeline_mode = #tpu.pipeline_mode<synchronous>, transform_indices = @transform_2, window_bounds = array<i64: 32, 1>}, {pipeline_mode = #tpu.pipeline_mode<synchronous>, transform_indices = @transform_3, window_bounds = array<i64: 64, 32>}, {pipeline_mode = #tpu.pipeline_mode<synchronous>, transform_indices = @transform_4, window_bounds = array<i64: 64, 1>}, {pipeline_mode = #tpu.pipeline_mode<synchronous>, transform_indices = @transform_5, window_bounds = array<i64: 32, 64>}, {pipeline_mode = #tpu.pipeline_mode<synchronous>, transform_indices = @transform_6, window_bounds = array<i64: 32, 1>}, {pipeline_mode = #tpu.pipeline_mode<synchronous>, transform_indices = @transform_7, window_bounds = array<i64: 1, 32>}, {transform_indices = @transform_8, window_bounds = array<i64: 1, 1>}, {transform_indices = @transform_9, window_bounds = array<i64: 1, 512>}]} {
    %c0 = arith.constant 0 : index
    %c0_0 = arith.constant 0 : index
    %0 = vector.load %arg1[%c0, %c0_0] : memref<512x16xf32, #tpu.memory_space<vmem>>, vector<512x16xf32>
    %1 = arith.truncf %0 : vector<512x16xf32> to vector<512x16xbf16>
    %c0_1 = arith.constant 0 : index
    %c0_2 = arith.constant 0 : index
    %2 = vector.load %arg2[%c0_1, %c0_2] : memref<32x16xbf16, #tpu.memory_space<vmem>>, vector<32x16xbf16>
    %cst = arith.constant dense<0.000000e+00> : vector<32x512xf32>
    %3 = tpu.matmul %2, %1, %cst {dimension_numbers = #tpu.dot_dimension_numbers<[1], [1], [0], [0], [0, 0, 1, 0], [], []>} : vector<32x16xbf16>, vector<512x16xbf16>, vector<32x512xf32> -> vector<32x512xf32>
    %c0_3 = arith.constant 0 : index
    %c0_4 = arith.constant 0 : index
    %4 = vector.load %arg3[%c0_3, %c0_4] : memref<32x1xf32, #tpu.memory_space<vmem>>, vector<32x1xf32>
    %5 = vector.broadcast %4 : vector<32x1xf32> to vector<32x512xf32>
    %6 = arith.addf %3, %5 : vector<32x512xf32>
    %cst_5 = arith.constant 0.000000e+00 : f32
    %7 = vector.broadcast %cst_5 : f32 to vector<32x512xf32>
    %8 = arith.maximumf %6, %7 : vector<32x512xf32>
    %c0_6 = arith.constant 0 : index
    %c0_7 = arith.constant 0 : index
    %9 = vector.load %arg4[%c0_6, %c0_7] : memref<64x32xbf16, #tpu.memory_space<vmem>>, vector<64x32xbf16>
    %10 = arith.truncf %8 : vector<32x512xf32> to vector<32x512xbf16>
    %cst_8 = arith.constant dense<0.000000e+00> : vector<64x512xf32>
    %11 = tpu.matmul %9, %10, %cst_8 {dimension_numbers = #tpu.dot_dimension_numbers<[1], [0], [0], [1], [0, 0, 1, 1], [], []>} : vector<64x32xbf16>, vector<32x512xbf16>, vector<64x512xf32> -> vector<64x512xf32>
    %c0_9 = arith.constant 0 : index
    %c0_10 = arith.constant 0 : index
    %12 = vector.load %arg5[%c0_9, %c0_10] : memref<64x1xf32, #tpu.memory_space<vmem>>, vector<64x1xf32>
    %13 = vector.broadcast %12 : vector<64x1xf32> to vector<64x512xf32>
    %14 = arith.addf %11, %13 : vector<64x512xf32>
    %cst_11 = arith.constant 0.000000e+00 : f32
    %15 = vector.broadcast %cst_11 : f32 to vector<64x512xf32>
    %16 = arith.maximumf %14, %15 : vector<64x512xf32>
    %c0_12 = arith.constant 0 : index
    %c0_13 = arith.constant 0 : index
    %17 = vector.load %arg6[%c0_12, %c0_13] : memref<32x64xbf16, #tpu.memory_space<vmem>>, vector<32x64xbf16>
    %18 = arith.truncf %16 : vector<64x512xf32> to vector<64x512xbf16>
    %cst_14 = arith.constant dense<0.000000e+00> : vector<32x512xf32>
    %19 = tpu.matmul %17, %18, %cst_14 {dimension_numbers = #tpu.dot_dimension_numbers<[1], [0], [0], [1], [0, 0, 1, 1], [], []>} : vector<32x64xbf16>, vector<64x512xbf16>, vector<32x512xf32> -> vector<32x512xf32>
    %c0_15 = arith.constant 0 : index
    %c0_16 = arith.constant 0 : index
    %20 = vector.load %arg7[%c0_15, %c0_16] : memref<32x1xf32, #tpu.memory_space<vmem>>, vector<32x1xf32>
    %21 = vector.broadcast %20 : vector<32x1xf32> to vector<32x512xf32>
    %22 = arith.addf %19, %21 : vector<32x512xf32>
    %cst_17 = arith.constant 0.000000e+00 : f32
    %23 = vector.broadcast %cst_17 : f32 to vector<32x512xf32>
    %24 = arith.maximumf %22, %23 : vector<32x512xf32>
    %c0_18 = arith.constant 0 : index
    %c0_19 = arith.constant 0 : index
    %25 = vector.load %arg8[%c0_18, %c0_19] : memref<1x32xbf16, #tpu.memory_space<vmem>>, vector<1x32xbf16>
    %26 = arith.truncf %24 : vector<32x512xf32> to vector<32x512xbf16>
    %cst_20 = arith.constant dense<0.000000e+00> : vector<1x512xf32>
    %27 = tpu.matmul %25, %26, %cst_20 {dimension_numbers = #tpu.dot_dimension_numbers<[1], [0], [0], [1], [0, 0, 1, 1], [], []>} : vector<1x32xbf16>, vector<32x512xbf16>, vector<1x512xf32> -> vector<1x512xf32>
    %c0_21 = arith.constant 0 : index
    %c0_22 = arith.constant 0 : index
    %28 = memref.load %arg9[%c0_21, %c0_22] : memref<1x1xf32, #tpu.memory_space<smem>>
    %29 = vector.broadcast %28 : f32 to vector<1x512xf32>
    %30 = arith.addf %27, %29 : vector<1x512xf32>
    %31 = arith.negf %30 : vector<1x512xf32>
    %32 = math.exp %31 : vector<1x512xf32>
    %cst_23 = arith.constant 1.000000e+00 : f32
    %33 = vector.broadcast %cst_23 : f32 to vector<1x512xf32>
    %34 = arith.addf %33, %32 : vector<1x512xf32>
    %35 = arith.divf %33, %34 : vector<1x512xf32>
    %c0_24 = arith.constant 0 : index
    %c0_25 = arith.constant 0 : index
    %36 = vector.load %arg10[%c0_24, %c0_25] : memref<1x512xf32, #tpu.memory_space<vmem>>, vector<1x512xf32>
    tpu.vector_store %arg10[%c0_24, %c0_25], %35 {strides = array<i32>} : memref<1x512xf32, #tpu.memory_space<vmem>>, vector<1x512xf32>,
    return
  }
  func.func @transform_0(%arg0: i32) -> (i32, i32) {
    %c0_i32 = arith.constant 0 : i32
    %c0_i32_0 = arith.constant 0 : i32
    return %arg0, %c0_i32 : i32, i32
  }
  func.func @transform_1(%arg0: i32) -> (i32, i32) {
    %c0_i32 = arith.constant 0 : i32
    %c0_i32_0 = arith.constant 0 : i32
    %c0_i32_1 = arith.constant 0 : i32
    return %c0_i32, %c0_i32_0 : i32, i32
  }
  func.func @transform_2(%arg0: i32) -> (i32, i32) {
    %c0_i32 = arith.constant 0 : i32
    %c0_i32_0 = arith.constant 0 : i32
    %c0_i32_1 = arith.constant 0 : i32
    return %c0_i32, %c0_i32_0 : i32, i32
  }
  func.func @transform_3(%arg0: i32) -> (i32, i32) {
    %c0_i32 = arith.constant 0 : i32
    %c0_i32_0 = arith.constant 0 : i32
    %c0_i32_1 = arith.constant 0 : i32
    return %c0_i32, %c0_i32_0 : i32, i32
  }
  func.func @transform_4(%arg0: i32) -> (i32, i32) {
    %c0_i32 = arith.constant 0 : i32
    %c0_i32_0 = arith.constant 0 : i32
    %c0_i32_1 = arith.constant 0 : i32
    return %c0_i32, %c0_i32_0 : i32, i32
  }
  func.func @transform_5(%arg0: i32) -> (i32, i32) {
    %c0_i32 = arith.constant 0 : i32
    %c0_i32_0 = arith.constant 0 : i32
    %c0_i32_1 = arith.constant 0 : i32
    return %c0_i32, %c0_i32_0 : i32, i32
  }
  func.func @transform_6(%arg0: i32) -> (i32, i32) {
    %c0_i32 = arith.constant 0 : i32
    %c0_i32_0 = arith.constant 0 : i32
    %c0_i32_1 = arith.constant 0 : i32
    return %c0_i32, %c0_i32_0 : i32, i32
  }
  func.func @transform_7(%arg0: i32) -> (i32, i32) {
    %c0_i32 = arith.constant 0 : i32
    %c0_i32_0 = arith.constant 0 : i32
    %c0_i32_1 = arith.constant 0 : i32
    return %c0_i32, %c0_i32_0 : i32, i32
  }
  func.func @transform_8(%arg0: i32) -> (i32, i32) {
    %c0_i32 = arith.constant 0 : i32
    %c0_i32_0 = arith.constant 0 : i32
    %c0_i32_1 = arith.constant 0 : i32
    return %c0_i32, %c0_i32_0 : i32, i32
  }
  func.func @transform_9(%arg0: i32) -> (i32, i32) {
    %c0_i32 = arith.constant 0 : i32
    %c0_i32_0 = arith.constant 0 : i32
    return %c0_i32, %arg0 : i32, i32
  }
}

</mosaic_0001>

<llo_original>
// kernel: simple_ffn_forward.1
$region0: #{simple_ffn_forward.1}
  #allocation0 [shape = 'u32[]', space=smem, size = 0x4, offset = 0x4, fixed_abs, tag = 'smem constant byte address 0x4 - core index']
  #allocation1 [shape = 'u32[72,128]{1,0:T(1,128)}', space=vmem, size = 0x9000, scoped, tag = 'internal scratch']
  #allocation2 [shape = 'f32[1,1]{1,0:T(1,128)S(6)}', space=smem, size = 0x200, scoped, tag = 'scoped memory for simple_ffn_forward.1']
  %s0 = inlined_call_operand.vmem [shape: f32[1024,16], index: 0, kind: input, shape index: {}]
  %s1 = inlined_call_operand.vmem [shape: bf16[32,16], index: 1, kind: input, shape index: {}]
  %s2 = inlined_call_operand.vmem [shape: f32[32,1], index: 2, kind: input, shape index: {}]
  %s3 = inlined_call_operand.vmem [shape: bf16[64,32], index: 3, kind: input, shape index: {}]
  %s4 = inlined_call_operand.vmem [shape: f32[64,1], index: 4, kind: input, shape index: {}]
  %s5 = inlined_call_operand.vmem [shape: bf16[32,64], index: 5, kind: input, shape index: {}]
  %s6 = inlined_call_operand.vmem [shape: f32[32,1], index: 6, kind: input, shape index: {}]
  %s7 = inlined_call_operand.vmem [shape: bf16[1,32], index: 7, kind: input, shape index: {}]
  %s8 = inlined_call_operand.<no memory space> [shape: f32[1,1], index: 8, kind: input, shape index: {}]
  %s9 = inlined_call_operand.hbm [shape: f32[1,1024], index: 9, kind: output, shape index: {}]
  %s10 = sld [smem:[#allocation0]]
  $region69: #{simple_ffn_forward.1} parent=0
    _
  %s12 = ssub.s32 1, %s10
  %s13 = scalar_select 0, %s12, %s10
  %14 = sst [smem:[#allocation2]] %s8
  $region1: #{simple_ffn_forward.1} parent=0
    #allocation3 [shape = 'u8[4096]{0}', space=vmem, size = 0x1000, scoped, tag = 'output window, operand 0']
    #allocation4 [shape = 's32[2]{0}', space=sflag, size = 0x8, scoped, tag = 'scoped memory for simple_ffn_forward.1']
    %15 = vsyncpa [#allocation4], 0
    %s16 = scalar_lea.sflag [#allocation4], 1
    %17 = vsyncpa %s16, 0
    loop: start=0, step=1, limit=4
    $region2: #{simple_ffn_forward.1} parent=1 // loop_pre_header
      _
    $region3: #{simple_ffn_forward.1} parent=1 // loop_header
      %s19 = sphi 0, %s23
      %p20 = scmp.ge.s32.totalorder %s19, 4
      %s29 = sphi 0, %s31
      %s32 = sphi 0, %s29
      %s33 = sphi 0, %s32
      %s49 = sphi 0, %s33
      %s53 = sphi 0, %s53
      %s55 = sphi 0, %s53
      %s56 = sphi 0, %s55
      %s70 = sphi 0, %s56
      %s74 = sphi 0, %s74
      %s76 = sphi 0, %s74
      %s77 = sphi 0, %s76
      %s91 = sphi 0, %s77
      %s95 = sphi 0, %s95
      %s97 = sphi 0, %s95
      %s98 = sphi 0, %s97
      %s112 = sphi 0, %s98
      %s116 = sphi 0, %s116
      %s118 = sphi 0, %s116
      %s119 = sphi 0, %s118
      %s133 = sphi 0, %s119
      %s137 = sphi 0, %s137
      %s139 = sphi 0, %s137
      %s140 = sphi 0, %s139
      %s154 = sphi 0, %s140
      %s158 = sphi 0, %s158
      %s160 = sphi 0, %s158
      %s161 = sphi 0, %s160
      %s175 = sphi 0, %s161
      %s179 = sphi 0, %s179
      %s181 = sphi 0, %s179
      %s182 = sphi 0, %s181
      %s196 = sphi 0, %s182
      %s200 = sphi 0, %s200
      %s202 = sphi 0, %s200
      %s203 = sphi 0, %s202
      %s217 = sphi 0, %s203
      %s223 = sphi 0, %s225
      %s226 = sphi 0, %s223
      %s227 = sphi 0, %s226
      %s243 = sphi 0, %s227
    $region4: #{simple_ffn_forward.1} parent=1 // loop_header_branch
      %22 = sbr.rel (%p20) target = $region8
    $region5: #{simple_ffn_forward.1} parent=1 // loop_body
      %s24 = ssub.s32 %s19, 1
      %s25 = ssub.s32 %s19, 2
      %s26 = sadd.s32 %s19, 1
      %s27 = ssub.s32 %s19, %s26
      %p28 = scmp.eq.s32.totalorder %s27, 0
      %s30 = sadd.s32 %s29, 1
      %s31 = scalar_select %p28, %s29, %s30
      %p34 = pneg %p28
      %p35 = scmp.eq.s32.totalorder %s19, 1
      %p36 = por %p34, %p35
      %p37 = scmp.ne.s32.totalorder %s29, %s32
      %p38 = scmp.eq.s32.totalorder %s19, 0
      %p39 = por %p37, %p38
      %p40 = scmp.ne.s32.totalorder %s29, %s32
      %p41 = scmp.eq.s32.totalorder %s24, 1
      %p42 = por %p40, %p41
      %p43 = scmp.ne.s32.totalorder %s32, %s33
      %p44 = scmp.eq.s32.totalorder %s24, 0
      %p45 = por %p43, %p44
      %p46 = scmp.ne.s32.totalorder %s32, %s33
      %p47 = scmp.eq.s32.totalorder %s25, 1
      %p48 = por %p46, %p47
      %p50 = scmp.ne.s32.totalorder %s33, %s49
      %p51 = scmp.eq.s32.totalorder %s25, 0
      %p52 = por %p50, %p51
      %s54 = sadd.s32 %s53, 1
      %p57 = scmp.eq.s32.totalorder %s19, 1
      %p58 = scmp.ne.s32.totalorder %s53, %s55
      %p59 = scmp.eq.s32.totalorder %s19, 0
      %p60 = por %p58, %p59
      %p61 = scmp.ne.s32.totalorder %s53, %s55
      %p62 = scmp.eq.s32.totalorder %s24, 1
      %p63 = por %p61, %p62
      %p64 = scmp.ne.s32.totalorder %s55, %s56
      %p65 = scmp.eq.s32.totalorder %s24, 0
      %p66 = por %p64, %p65
      %p67 = scmp.ne.s32.totalorder %s55, %s56
      %p68 = scmp.eq.s32.totalorder %s25, 1
      %p69 = por %p67, %p68
      %p71 = scmp.ne.s32.totalorder %s56, %s70
      %p72 = scmp.eq.s32.totalorder %s25, 0
      %p73 = por %p71, %p72
      %s75 = sadd.s32 %s74, 1
      %p78 = scmp.eq.s32.totalorder %s19, 1
      %p79 = scmp.ne.s32.totalorder %s74, %s76
      %p80 = scmp.eq.s32.totalorder %s19, 0
      %p81 = por %p79, %p80
      %p82 = scmp.ne.s32.totalorder %s74, %s76
      %p83 = scmp.eq.s32.totalorder %s24, 1
      %p84 = por %p82, %p83
      %p85 = scmp.ne.s32.totalorder %s76, %s77
      %p86 = scmp.eq.s32.totalorder %s24, 0
      %p87 = por %p85, %p86
      %p88 = scmp.ne.s32.totalorder %s76, %s77
      %p89 = scmp.eq.s32.totalorder %s25, 1
      %p90 = por %p88, %p89
      %p92 = scmp.ne.s32.totalorder %s77, %s91
      %p93 = scmp.eq.s32.totalorder %s25, 0
      %p94 = por %p92, %p93
      %s96 = sadd.s32 %s95, 1
      %p99 = scmp.eq.s32.totalorder %s19, 1
      %p100 = scmp.ne.s32.totalorder %s95, %s97
      %p101 = scmp.eq.s32.totalorder %s19, 0
      %p102 = por %p100, %p101
      %p103 = scmp.ne.s32.totalorder %s95, %s97
      %p104 = scmp.eq.s32.totalorder %s24, 1
      %p105 = por %p103, %p104
      %p106 = scmp.ne.s32.totalorder %s97, %s98
      %p107 = scmp.eq.s32.totalorder %s24, 0
      %p108 = por %p106, %p107
      %p109 = scmp.ne.s32.totalorder %s97, %s98
      %p110 = scmp.eq.s32.totalorder %s25, 1
      %p111 = por %p109, %p110
      %p113 = scmp.ne.s32.totalorder %s98, %s112
      %p114 = scmp.eq.s32.totalorder %s25, 0
      %p115 = por %p113, %p114
      %s117 = sadd.s32 %s116, 1
      %p120 = scmp.eq.s32.totalorder %s19, 1
      %p121 = scmp.ne.s32.totalorder %s116, %s118
      %p122 = scmp.eq.s32.totalorder %s19, 0
      %p123 = por %p121, %p122
      %p124 = scmp.ne.s32.totalorder %s116, %s118
      %p125 = scmp.eq.s32.totalorder %s24, 1
      %p126 = por %p124, %p125
      %p127 = scmp.ne.s32.totalorder %s118, %s119
      %p128 = scmp.eq.s32.totalorder %s24, 0
      %p129 = por %p127, %p128
      %p130 = scmp.ne.s32.totalorder %s118, %s119
      %p131 = scmp.eq.s32.totalorder %s25, 1
      %p132 = por %p130, %p131
      %p134 = scmp.ne.s32.totalorder %s119, %s133
      %p135 = scmp.eq.s32.totalorder %s25, 0
      %p136 = por %p134, %p135
      %s138 = sadd.s32 %s137, 1
      %p141 = scmp.eq.s32.totalorder %s19, 1
      %p142 = scmp.ne.s32.totalorder %s137, %s139
      %p143 = scmp.eq.s32.totalorder %s19, 0
      %p144 = por %p142, %p143
      %p145 = scmp.ne.s32.totalorder %s137, %s139
      %p146 = scmp.eq.s32.totalorder %s24, 1
      %p147 = por %p145, %p146
      %p148 = scmp.ne.s32.totalorder %s139, %s140
      %p149 = scmp.eq.s32.totalorder %s24, 0
      %p150 = por %p148, %p149
      %p151 = scmp.ne.s32.totalorder %s139, %s140
      %p152 = scmp.eq.s32.totalorder %s25, 1
      %p153 = por %p151, %p152
      %p155 = scmp.ne.s32.totalorder %s140, %s154
      %p156 = scmp.eq.s32.totalorder %s25, 0
      %p157 = por %p155, %p156
      %s159 = sadd.s32 %s158, 1
      %p162 = scmp.eq.s32.totalorder %s19, 1
      %p163 = scmp.ne.s32.totalorder %s158, %s160
      %p164 = scmp.eq.s32.totalorder %s19, 0
      %p165 = por %p163, %p164
      %p166 = scmp.ne.s32.totalorder %s158, %s160
      %p167 = scmp.eq.s32.totalorder %s24, 1
      %p168 = por %p166, %p167
      %p169 = scmp.ne.s32.totalorder %s160, %s161
      %p170 = scmp.eq.s32.totalorder %s24, 0
      %p171 = por %p169, %p170
      %p172 = scmp.ne.s32.totalorder %s160, %s161
      %p173 = scmp.eq.s32.totalorder %s25, 1
      %p174 = por %p172, %p173
      %p176 = scmp.ne.s32.totalorder %s161, %s175
      %p177 = scmp.eq.s32.totalorder %s25, 0
      %p178 = por %p176, %p177
      %s180 = sadd.s32 %s179, 1
      %p183 = scmp.eq.s32.totalorder %s19, 1
      %p184 = scmp.ne.s32.totalorder %s179, %s181
      %p185 = scmp.eq.s32.totalorder %s19, 0
      %p186 = por %p184, %p185
      %p187 = scmp.ne.s32.totalorder %s179, %s181
      %p188 = scmp.eq.s32.totalorder %s24, 1
      %p189 = por %p187, %p188
      %p190 = scmp.ne.s32.totalorder %s181, %s182
      %p191 = scmp.eq.s32.totalorder %s24, 0
      %p192 = por %p190, %p191
      %p193 = scmp.ne.s32.totalorder %s181, %s182
      %p194 = scmp.eq.s32.totalorder %s25, 1
      %p195 = por %p193, %p194
      %p197 = scmp.ne.s32.totalorder %s182, %s196
      %p198 = scmp.eq.s32.totalorder %s25, 0
      %p199 = por %p197, %p198
      %s201 = sadd.s32 %s200, 1
      %p204 = scmp.eq.s32.totalorder %s19, 1
      %p205 = scmp.ne.s32.totalorder %s200, %s202
      %p206 = scmp.eq.s32.totalorder %s19, 0
      %p207 = por %p205, %p206
      %p208 = scmp.ne.s32.totalorder %s200, %s202
      %p209 = scmp.eq.s32.totalorder %s24, 1
      %p210 = por %p208, %p209
      %p211 = scmp.ne.s32.totalorder %s202, %s203
      %p212 = scmp.eq.s32.totalorder %s24, 0
      %p213 = por %p211, %p212
      %p214 = scmp.ne.s32.totalorder %s202, %s203
      %p215 = scmp.eq.s32.totalorder %s25, 1
      %p216 = por %p214, %p215
      %p218 = scmp.ne.s32.totalorder %s203, %s217
      %p219 = scmp.eq.s32.totalorder %s25, 0
      %p220 = por %p218, %p219
      %s221 = ssub.s32 %s19, %s26
      %p222 = scmp.eq.s32.totalorder %s221, 0
      %s224 = sadd.s32 %s223, 1
      %s225 = scalar_select %p222, %s223, %s224
      %p228 = pneg %p222
      %p229 = scmp.eq.s32.totalorder %s19, 1
      %p230 = por %p228, %p229
      %p231 = scmp.ne.s32.totalorder %s223, %s226
      %p232 = scmp.eq.s32.totalorder %s19, 0
      %p233 = por %p231, %p232
      %p234 = scmp.ne.s32.totalorder %s223, %s226
      %p235 = scmp.eq.s32.totalorder %s24, 1
      %p236 = por %p234, %p235
      %p237 = scmp.ne.s32.totalorder %s226, %s227
      %p238 = scmp.eq.s32.totalorder %s24, 0
      %p239 = por %p237, %p238
      %p240 = scmp.ne.s32.totalorder %s226, %s227
      %p241 = scmp.eq.s32.totalorder %s25, 1
      %p242 = por %p240, %p241
      %p244 = scmp.ne.s32.totalorder %s227, %s243
      %p245 = scmp.eq.s32.totalorder %s25, 0
      %p246 = por %p244, %p245
      %p247 = scmp.le.s32.totalorder 1, %s19
      %p248 = scmp.lt.s32.totalorder %s19, 3
      %p249 = pnand %p247, %p248
      %p250 = pneg %p249
      // Predicated region
      $region9: #{simple_ffn_forward.1} parent=5 // pred_check
        _
      $region10: #{simple_ffn_forward.1} parent=5 // pred_check_branch
        %252 = sbr.rel (%p249) target = $region12
      $region11: #{simple_ffn_forward.1} parent=5 // pred_region
        %s253 = ssub.s32 %s19, 1
        // Predicated region
        $region13: #{simple_ffn_forward.1} parent=11 // pred_check
          %p254 = pneg %p66
        $region14: #{simple_ffn_forward.1} parent=11 // pred_check_branch
          %256 = sbr.rel (%p254) target = $region16
        $region15: #{simple_ffn_forward.1} parent=11 // pred_region
          _
        $region16: #{simple_ffn_forward.1} parent=11 // pred_fallthru
          _
        // Predicated region
        $region17: #{simple_ffn_forward.1} parent=11 // pred_check
          %p257 = pneg %p87
        $region18: #{simple_ffn_forward.1} parent=11 // pred_check_branch
          %259 = sbr.rel (%p257) target = $region20
        $region19: #{simple_ffn_forward.1} parent=11 // pred_region
          _
        $region20: #{simple_ffn_forward.1} parent=11 // pred_fallthru
          _
        // Predicated region
        $region21: #{simple_ffn_forward.1} parent=11 // pred_check
          %p260 = pneg %p108
        $region22: #{simple_ffn_forward.1} parent=11 // pred_check_branch
          %262 = sbr.rel (%p260) target = $region24
        $region23: #{simple_ffn_forward.1} parent=11 // pred_region
          _
        $region24: #{simple_ffn_forward.1} parent=11 // pred_fallthru
          _
        // Predicated region
        $region25: #{simple_ffn_forward.1} parent=11 // pred_check
          %p263 = pneg %p129
        $region26: #{simple_ffn_forward.1} parent=11 // pred_check_branch
          %265 = sbr.rel (%p263) target = $region28
        $region27: #{simple_ffn_forward.1} parent=11 // pred_region
          _
        $region28: #{simple_ffn_forward.1} parent=11 // pred_fallthru
          _
        // Predicated region
        $region29: #{simple_ffn_forward.1} parent=11 // pred_check
          %p266 = pneg %p150
        $region30: #{simple_ffn_forward.1} parent=11 // pred_check_branch
          %268 = sbr.rel (%p266) target = $region32
        $region31: #{simple_ffn_forward.1} parent=11 // pred_region
          _
        $region32: #{simple_ffn_forward.1} parent=11 // pred_fallthru
          _
        // Predicated region
        $region33: #{simple_ffn_forward.1} parent=11 // pred_check
          %p269 = pneg %p171
        $region34: #{simple_ffn_forward.1} parent=11 // pred_check_branch
          %271 = sbr.rel (%p269) target = $region36
        $region35: #{simple_ffn_forward.1} parent=11 // pred_region
          _
        $region36: #{simple_ffn_forward.1} parent=11 // pred_fallthru
          _
        // Predicated region
        $region37: #{simple_ffn_forward.1} parent=11 // pred_check
          %p272 = pneg %p192
        $region38: #{simple_ffn_forward.1} parent=11 // pred_check_branch
          %274 = sbr.rel (%p272) target = $region40
        $region39: #{simple_ffn_forward.1} parent=11 // pred_region
          _
        $region40: #{simple_ffn_forward.1} parent=11 // pred_fallthru
          _
        // Predicated region
        $region41: #{simple_ffn_forward.1} parent=11 // pred_check
          %p275 = pneg %p213
        $region42: #{simple_ffn_forward.1} parent=11 // pred_check_branch
          %277 = sbr.rel (%p275) target = $region44
        $region43: #{simple_ffn_forward.1} parent=11 // pred_region
          _
        $region44: #{simple_ffn_forward.1} parent=11 // pred_fallthru
          _
      $region12: #{simple_ffn_forward.1} parent=5 // pred_fallthru
        _
      %p278 = scmp.lt.s32.totalorder %s19, 2
      // Predicated region
      $region45: #{simple_ffn_forward.1} parent=5 // pred_check
        %p279 = pneg %p278
      $region46: #{simple_ffn_forward.1} parent=5 // pred_check_branch
        %281 = sbr.rel (%p279) target = $region48
      $region47: #{simple_ffn_forward.1} parent=5 // pred_region
        // Predicated region
        $region49: #{simple_ffn_forward.1} parent=47 // pred_check
          %p282 = pneg %p39
        $region50: #{simple_ffn_forward.1} parent=47 // pred_check_branch
          %284 = sbr.rel (%p282) target = $region52
        $region51: #{simple_ffn_forward.1} parent=47 // pred_region
          %s285 = smul.u32 64, %s19
          %p286 = scmp.lt.s32.totalorder %s285, 127
          %s287 = scalar_select %p286, %s285, 127
          %s288 = smul.addr %s287, 8
          %s289 = scalar_lea.vmem %s0, %s288
          %s290 = smul.u32 64, %s19
        $region52: #{simple_ffn_forward.1} parent=47 // pred_fallthru
          _
      $region48: #{simple_ffn_forward.1} parent=5 // pred_fallthru
        _
      %p291 = scmp.le.s32.totalorder 1, %s19
      %p292 = scmp.lt.s32.totalorder %s19, 3
      %p293 = pnand %p291, %p292
      %p294 = pneg %p293
      // Predicated region
      $region53: #{simple_ffn_forward.1} parent=5 // pred_check
        _
      $region54: #{simple_ffn_forward.1} parent=5 // pred_check_branch
        %296 = sbr.rel (%p293) target = $region56
      $region55: #{simple_ffn_forward.1} parent=5 // pred_region
        %s297 = ssub.s32 %s19, 1
        %s298 = smul.u32 64, %s24
        %p299 = scmp.lt.s32.totalorder %s298, 127
        %s300 = scalar_select %p299, %s298, 127
        %s301 = smul.addr %s300, 8
        %s302 = scalar_lea.vmem %s0, %s301
        %p303 = pneg %p45
        %p304 = pneg %p42
        %p305 = pneg %p66
        %p306 = pneg %p63
        %p307 = pneg %p87
        %p308 = pneg %p84
        %p309 = pneg %p108
        %p310 = pneg %p105
        %p311 = pneg %p129
        %p312 = pneg %p126
        %p313 = pneg %p150
        %p314 = pneg %p147
        %p315 = pneg %p171
        %p316 = pneg %p168
        %p317 = pneg %p192
        %p318 = pneg %p189
        %p319 = pneg %p213
        %p320 = pneg %p210
        %p321 = pneg %p239
        %p322 = pneg %p236
        %s323 = sand.u32 %s226, 1
        %s324 = scalar_lea.sflag [#allocation4], %s323
        %s325 = sand.u32 %s226, 1
        %s326 = smul.addr %s325, 4
        %s327 = scalar_lea.vmem [#allocation3], %s326
        %s328 = smul.u32 64, %s24
        %p329 = scmp.lt.s32.totalorder %s328, 127
        %s330 = scalar_select %p329, %s328, 127
        %s331 = smul.addr %s330, 8
        %s332 = scalar_lea.vmem %s0, %s331
        %s333 = smul.u32 64, %s24
        %s334 = smul.u32 4, %s24
        %v336 = vld [vmem:[%s332] sm:$0xff]
        %v337 = vld [vmem:[%s332 + $0x8] sm:$0xff]
        %v338 = vld [vmem:[%s332 + $0x10] sm:$0xff]
        %v339 = vld [vmem:[%s332 + $0x18] sm:$0xff]
        %v340 = vld [vmem:[%s332 + $0x20] sm:$0xff]
        %v341 = vld [vmem:[%s332 + $0x28] sm:$0xff]
        %v342 = vld [vmem:[%s332 + $0x30] sm:$0xff]
        %v343 = vld [vmem:[%s332 + $0x38] sm:$0xff]
        %v344 = vld [vmem:[%s332 + $0x40] sm:$0xff]
        %v345 = vld [vmem:[%s332 + $0x48] sm:$0xff]
        %v346 = vld [vmem:[%s332 + $0x50] sm:$0xff]
        %v347 = vld [vmem:[%s332 + $0x58] sm:$0xff]
        %v348 = vld [vmem:[%s332 + $0x60] sm:$0xff]
        %v349 = vld [vmem:[%s332 + $0x68] sm:$0xff]
        %v350 = vld [vmem:[%s332 + $0x70] sm:$0xff]
        %v351 = vld [vmem:[%s332 + $0x78] sm:$0xff]
        %v352 = vld [vmem:[%s332 + $0x80] sm:$0xff]
        %v353 = vld [vmem:[%s332 + $0x88] sm:$0xff]
        %v354 = vld [vmem:[%s332 + $0x90] sm:$0xff]
        %v355 = vld [vmem:[%s332 + $0x98] sm:$0xff]
        %v356 = vld [vmem:[%s332 + $0xa0] sm:$0xff]
        %v357 = vld [vmem:[%s332 + $0xa8] sm:$0xff]
        %v358 = vld [vmem:[%s332 + $0xb0] sm:$0xff]
        %v359 = vld [vmem:[%s332 + $0xb8] sm:$0xff]
        %v360 = vld [vmem:[%s332 + $0xc0] sm:$0xff]
        %v361 = vld [vmem:[%s332 + $0xc8] sm:$0xff]
        %v362 = vld [vmem:[%s332 + $0xd0] sm:$0xff]
        %v363 = vld [vmem:[%s332 + $0xd8] sm:$0xff]
        %v364 = vld [vmem:[%s332 + $0xe0] sm:$0xff]
        %v365 = vld [vmem:[%s332 + $0xe8] sm:$0xff]
        %v366 = vld [vmem:[%s332 + $0xf0] sm:$0xff]
        %v367 = vld [vmem:[%s332 + $0xf8] sm:$0xff]
        %v368 = vld [vmem:[%s332 + $0x100] sm:$0xff]
        %v369 = vld [vmem:[%s332 + $0x108] sm:$0xff]
        %v370 = vld [vmem:[%s332 + $0x110] sm:$0xff]
        %v371 = vld [vmem:[%s332 + $0x118] sm:$0xff]
        %v372 = vld [vmem:[%s332 + $0x120] sm:$0xff]
        %v373 = vld [vmem:[%s332 + $0x128] sm:$0xff]
        %v374 = vld [vmem:[%s332 + $0x130] sm:$0xff]
        %v375 = vld [vmem:[%s332 + $0x138] sm:$0xff]
        %v376 = vld [vmem:[%s332 + $0x140] sm:$0xff]
        %v377 = vld [vmem:[%s332 + $0x148] sm:$0xff]
        %v378 = vld [vmem:[%s332 + $0x150] sm:$0xff]
        %v379 = vld [vmem:[%s332 + $0x158] sm:$0xff]
        %v380 = vld [vmem:[%s332 + $0x160] sm:$0xff]
        %v381 = vld [vmem:[%s332 + $0x168] sm:$0xff]
        %v382 = vld [vmem:[%s332 + $0x170] sm:$0xff]
        %v383 = vld [vmem:[%s332 + $0x178] sm:$0xff]
        %v384 = vld [vmem:[%s332 + $0x180] sm:$0xff]
        %v385 = vld [vmem:[%s332 + $0x188] sm:$0xff]
        %v386 = vld [vmem:[%s332 + $0x190] sm:$0xff]
        %v387 = vld [vmem:[%s332 + $0x198] sm:$0xff]
        %v388 = vld [vmem:[%s332 + $0x1a0] sm:$0xff]
        %v389 = vld [vmem:[%s332 + $0x1a8] sm:$0xff]
        %v390 = vld [vmem:[%s332 + $0x1b0] sm:$0xff]
        %v391 = vld [vmem:[%s332 + $0x1b8] sm:$0xff]
        %v392 = vld [vmem:[%s332 + $0x1c0] sm:$0xff]
        %v393 = vld [vmem:[%s332 + $0x1c8] sm:$0xff]
        %v394 = vld [vmem:[%s332 + $0x1d0] sm:$0xff]
        %v395 = vld [vmem:[%s332 + $0x1d8] sm:$0xff]
        %v396 = vld [vmem:[%s332 + $0x1e0] sm:$0xff]
        %v397 = vld [vmem:[%s332 + $0x1e8] sm:$0xff]
        %v398 = vld [vmem:[%s332 + $0x1f0] sm:$0xff]
        %v399 = vld [vmem:[%s332 + $0x1f8] sm:$0xff]
        %v400 = vpack.c.bf16 %v337, %v336
        %v401 = vpack.c.bf16 %v339, %v338
        %v402 = vpack.c.bf16 %v341, %v340
        %v403 = vpack.c.bf16 %v343, %v342
        %v404 = vpack.c.bf16 %v345, %v344
        %v405 = vpack.c.bf16 %v347, %v346
        %v406 = vpack.c.bf16 %v349, %v348
        %v407 = vpack.c.bf16 %v351, %v350
        %v408 = vpack.c.bf16 %v353, %v352
        %v409 = vpack.c.bf16 %v355, %v354
        %v410 = vpack.c.bf16 %v357, %v356
        %v411 = vpack.c.bf16 %v359, %v358
        %v412 = vpack.c.bf16 %v361, %v360
        %v413 = vpack.c.bf16 %v363, %v362
        %v414 = vpack.c.bf16 %v365, %v364
        %v415 = vpack.c.bf16 %v367, %v366
        %v416 = vpack.c.bf16 %v369, %v368
        %v417 = vpack.c.bf16 %v371, %v370
        %v418 = vpack.c.bf16 %v373, %v372
        %v419 = vpack.c.bf16 %v375, %v374
        %v420 = vpack.c.bf16 %v377, %v376
        %v421 = vpack.c.bf16 %v379, %v378
        %v422 = vpack.c.bf16 %v381, %v380
        %v423 = vpack.c.bf16 %v383, %v382
        %v424 = vpack.c.bf16 %v385, %v384
        %v425 = vpack.c.bf16 %v387, %v386
        %v426 = vpack.c.bf16 %v389, %v388
        %v427 = vpack.c.bf16 %v391, %v390
        %v428 = vpack.c.bf16 %v393, %v392
        %v429 = vpack.c.bf16 %v395, %v394
        %v430 = vpack.c.bf16 %v397, %v396
        %v431 = vpack.c.bf16 %v399, %v398
        %v432 = vld [vmem:[%s1] sm:$0xf]
        %v433 = vld [vmem:[%s1 + $0x4] sm:$0xf]
        %v434 = vld [vmem:[%s1 + $0x8] sm:$0xf]
        %v435 = vld [vmem:[%s1 + $0xc] sm:$0xf]
        %v436 = vld [vmem:[%s2] sm:$0xff]
        %v437 = vld [vmem:[%s2 + $0x8] sm:$0xff]
        %v438 = vld [vmem:[%s2 + $0x10] sm:$0xff]
        %v439 = vld [vmem:[%s2 + $0x18] sm:$0xff]
        %441 = vset.pattern.permute.xlu0 0
        %442 = vperm.xlu0 %441, %v436
        %v443 = vpop.permute.xlu0 %442
        %446 = vset.pattern.permute.xlu0 0
        %447 = vperm.xlu0 %446, %v437
        %v448 = vpop.permute.xlu0 %447
        %451 = vset.pattern.permute.xlu0 0
        %452 = vperm.xlu0 %451, %v438
        %v453 = vpop.permute.xlu0 %452
        %456 = vset.pattern.permute.xlu0 0
        %457 = vperm.xlu0 %456, %v439
        %v458 = vpop.permute.xlu0 %457
        %v464 = vunpack.c.l.b16 %v432
        %v465 = vunpack.c.l.b16 %v433
        %v466 = vunpack.c.l.b16 %v434
        %v467 = vunpack.c.l.b16 %v435
        %v468 = vpack.c.b16 %v465, %v464
        %v469 = vpack.c.b16 %v467, %v466
        %vm470 = vcmask 130048
        %v472 = vsel %vm470, %v468, 0
        %v475 = vsel %vm470, %v469, 0
        %v478 = vsel %vm470, %v400, 0
        %v481 = vsel %vm470, %v401, 0
        %v484 = vsel %vm470, %v402, 0
        %v487 = vsel %vm470, %v403, 0
        %v490 = vsel %vm470, %v404, 0
        %v493 = vsel %vm470, %v405, 0
        %v496 = vsel %vm470, %v406, 0
        %v499 = vsel %vm470, %v407, 0
        %v502 = vsel %vm470, %v408, 0
        %v505 = vsel %vm470, %v409, 0
        %v508 = vsel %vm470, %v410, 0
        %v511 = vsel %vm470, %v411, 0
        %v514 = vsel %vm470, %v412, 0
        %v517 = vsel %vm470, %v413, 0
        %v520 = vsel %vm470, %v414, 0
        %v523 = vsel %vm470, %v415, 0
        %v526 = vsel %vm470, %v416, 0
        %v529 = vsel %vm470, %v417, 0
        %v532 = vsel %vm470, %v418, 0
        %v535 = vsel %vm470, %v419, 0
        %v538 = vsel %vm470, %v420, 0
        %v541 = vsel %vm470, %v421, 0
        %v544 = vsel %vm470, %v422, 0
        %v547 = vsel %vm470, %v423, 0
        %v550 = vsel %vm470, %v424, 0
        %v553 = vsel %vm470, %v425, 0
        %v556 = vsel %vm470, %v426, 0
        %v559 = vsel %vm470, %v427, 0
        %v562 = vsel %vm470, %v428, 0
        %v565 = vsel %vm470, %v429, 0
        %v568 = vsel %vm470, %v430, 0
        %v571 = vsel %vm470, %v431, 0
        %573 = vmatpush.bf16.xpose.msra.mxu0 %v499
        %574 = vmatpush.bf16.xpose.msra.mxu0 %v496
        %575 = vmatpush.bf16.xpose.msra.mxu0 %v493
        %576 = vmatpush.bf16.xpose.msra.mxu0 %v490
        %577 = vmatpush.bf16.xpose.msra.mxu0 %v487
        %578 = vmatpush.bf16.xpose.msra.mxu0 %v484
        %579 = vmatpush.bf16.xpose.msra.mxu0 %v481
        %580 = vmatpush.bf16.xpose.msra.mxu0 %v478
        %581 = vmatmul.bf16.gmra.mxu0 %v472
        %v582 = vpop.f32.mrf.mxu0
        %v583 = vadd.f32 %v443, %v582
        %v584 = vpop.f32.mrf.mxu0
        %v585 = vadd.f32 %v448, %v584
        %586 = vmatmul.bf16.gmra.mxu0 %v475
        %v587 = vpop.f32.mrf.mxu0
        %v588 = vadd.f32 %v453, %v587
        %v589 = vpop.f32.mrf.mxu0
        %v590 = vadd.f32 %v458, %v589
        %591 = vdwg.mxu0
        %592 = vmatpush.bf16.xpose.msra.mxu0 %v523
        %593 = vmatpush.bf16.xpose.msra.mxu0 %v520
        %594 = vmatpush.bf16.xpose.msra.mxu0 %v517
        %595 = vmatpush.bf16.xpose.msra.mxu0 %v514
        %596 = vmatpush.bf16.xpose.msra.mxu0 %v511
        %597 = vmatpush.bf16.xpose.msra.mxu0 %v508
        %598 = vmatpush.bf16.xpose.msra.mxu0 %v505
        %599 = vmatpush.bf16.xpose.msra.mxu0 %v502
        %600 = vmatmul.bf16.gmra.mxu0 %v472
        %v601 = vpop.f32.mrf.mxu0
        %v602 = vadd.f32 %v443, %v601
        %v603 = vpop.f32.mrf.mxu0
        %v604 = vadd.f32 %v448, %v603
        %605 = vmatmul.bf16.gmra.mxu0 %v475
        %v606 = vpop.f32.mrf.mxu0
        %v607 = vadd.f32 %v453, %v606
        %v608 = vpop.f32.mrf.mxu0
        %v609 = vadd.f32 %v458, %v608
        %610 = vdwg.mxu0
        %611 = vmatpush.bf16.xpose.msra.mxu0 %v547
        %612 = vmatpush.bf16.xpose.msra.mxu0 %v544
        %613 = vmatpush.bf16.xpose.msra.mxu0 %v541
        %614 = vmatpush.bf16.xpose.msra.mxu0 %v538
        %615 = vmatpush.bf16.xpose.msra.mxu0 %v535
        %616 = vmatpush.bf16.xpose.msra.mxu0 %v532
        %617 = vmatpush.bf16.xpose.msra.mxu0 %v529
        %618 = vmatpush.bf16.xpose.msra.mxu0 %v526
        %619 = vmatmul.bf16.gmra.mxu0 %v472
        %v620 = vpop.f32.mrf.mxu0
        %v621 = vadd.f32 %v443, %v620
        %v622 = vpop.f32.mrf.mxu0
        %v623 = vadd.f32 %v448, %v622
        %624 = vmatmul.bf16.gmra.mxu0 %v475
        %v625 = vpop.f32.mrf.mxu0
        %v626 = vadd.f32 %v453, %v625
        %v627 = vpop.f32.mrf.mxu0
        %v628 = vadd.f32 %v458, %v627
        %629 = vdwg.mxu0
        %630 = vmatpush.bf16.xpose.msra.mxu0 %v571
        %631 = vmatpush.bf16.xpose.msra.mxu0 %v568
        %632 = vmatpush.bf16.xpose.msra.mxu0 %v565
        %633 = vmatpush.bf16.xpose.msra.mxu0 %v562
        %634 = vmatpush.bf16.xpose.msra.mxu0 %v559
        %635 = vmatpush.bf16.xpose.msra.mxu0 %v556
        %636 = vmatpush.bf16.xpose.msra.mxu0 %v553
        %637 = vmatpush.bf16.xpose.msra.mxu0 %v550
        %638 = vmatmul.bf16.gmra.mxu0 %v472
        %v639 = vpop.f32.mrf.mxu0
        %v640 = vadd.f32 %v443, %v639
        %v641 = vpop.f32.mrf.mxu0
        %v642 = vadd.f32 %v448, %v641
        %643 = vmatmul.bf16.gmra.mxu0 %v475
        %v644 = vpop.f32.mrf.mxu0
        %v645 = vadd.f32 %v453, %v644
        %v646 = vpop.f32.mrf.mxu0
        %v647 = vadd.f32 %v458, %v646
        %648 = vdwg.mxu0
        %v649 = vmax.f32 %v583, 0.0
        %v650 = vmax.f32 %v602, 0.0
        %v651 = vmax.f32 %v621, 0.0
        %v652 = vmax.f32 %v640, 0.0
        %v653 = vmax.f32 %v585, 0.0
        %v654 = vmax.f32 %v604, 0.0
        %v655 = vmax.f32 %v623, 0.0
        %v656 = vmax.f32 %v642, 0.0
        %v657 = vmax.f32 %v588, 0.0
        %v658 = vmax.f32 %v607, 0.0
        %v659 = vmax.f32 %v626, 0.0
        %v660 = vmax.f32 %v645, 0.0
        %v661 = vmax.f32 %v590, 0.0
        %v662 = vmax.f32 %v609, 0.0
        %v663 = vmax.f32 %v628, 0.0
        %v664 = vmax.f32 %v647, 0.0
        %v665 = vld [vmem:[%s3] sm:$0xf]
        %v666 = vld [vmem:[%s3 + $0x4] sm:$0xf]
        %v667 = vld [vmem:[%s3 + $0x8] sm:$0xf]
        %v668 = vld [vmem:[%s3 + $0xc] sm:$0xf]
        %v669 = vld [vmem:[%s3 + $0x10] sm:$0xf]
        %v670 = vld [vmem:[%s3 + $0x14] sm:$0xf]
        %v671 = vld [vmem:[%s3 + $0x18] sm:$0xf]
        %v672 = vld [vmem:[%s3 + $0x1c] sm:$0xf]
        %v673 = vpack.c.bf16 %v653, %v649
        %v674 = vpack.c.bf16 %v654, %v650
        %v675 = vpack.c.bf16 %v655, %v651
        %v676 = vpack.c.bf16 %v656, %v652
        %v677 = vpack.c.bf16 %v661, %v657
        %v678 = vpack.c.bf16 %v662, %v658
        %v679 = vpack.c.bf16 %v663, %v659
        %v680 = vpack.c.bf16 %v664, %v660
        %v681 = vld [vmem:[%s4] sm:$0xff]
        %v682 = vld [vmem:[%s4 + $0x8] sm:$0xff]
        %v683 = vld [vmem:[%s4 + $0x10] sm:$0xff]
        %v684 = vld [vmem:[%s4 + $0x18] sm:$0xff]
        %v685 = vld [vmem:[%s4 + $0x20] sm:$0xff]
        %v686 = vld [vmem:[%s4 + $0x28] sm:$0xff]
        %v687 = vld [vmem:[%s4 + $0x30] sm:$0xff]
        %v688 = vld [vmem:[%s4 + $0x38] sm:$0xff]
        %690 = vset.pattern.permute.xlu0 0
        %691 = vperm.xlu0 %690, %v681
        %v692 = vpop.permute.xlu0 %691
        %695 = vset.pattern.permute.xlu0 0
        %696 = vperm.xlu0 %695, %v682
        %v697 = vpop.permute.xlu0 %696
        %700 = vset.pattern.permute.xlu0 0
        %701 = vperm.xlu0 %700, %v683
        %v702 = vpop.permute.xlu0 %701
        %705 = vset.pattern.permute.xlu0 0
        %706 = vperm.xlu0 %705, %v684
        %v707 = vpop.permute.xlu0 %706
        %710 = vset.pattern.permute.xlu0 0
        %711 = vperm.xlu0 %710, %v685
        %v712 = vpop.permute.xlu0 %711
        %715 = vset.pattern.permute.xlu0 0
        %716 = vperm.xlu0 %715, %v686
        %v717 = vpop.permute.xlu0 %716
        %720 = vset.pattern.permute.xlu0 0
        %721 = vperm.xlu0 %720, %v687
        %v722 = vpop.permute.xlu0 %721
        %725 = vset.pattern.permute.xlu0 0
        %726 = vperm.xlu0 %725, %v688
        %v727 = vpop.permute.xlu0 %726
        %v737 = vunpack.c.l.b16 %v665
        %v738 = vunpack.c.l.b16 %v666
        %v739 = vunpack.c.l.b16 %v667
        %v740 = vunpack.c.l.b16 %v668
        %v741 = vunpack.c.l.b16 %v669
        %v742 = vunpack.c.l.b16 %v670
        %v743 = vunpack.c.l.b16 %v671
        %v744 = vunpack.c.l.b16 %v672
        %v745 = vpack.c.b16 %v738, %v737
        %v746 = vpack.c.b16 %v740, %v739
        %v747 = vpack.c.b16 %v742, %v741
        %v748 = vpack.c.b16 %v744, %v743
        %vm749 = vcmask 261120
        %v751 = vsel %vm749, %v745, 0
        %v754 = vsel %vm749, %v746, 0
        %v757 = vsel %vm749, %v747, 0
        %v760 = vsel %vm749, %v748, 0
        %762 = vmatpush.bf16.msra.mxu0 0
        %763 = vmatpush.bf16.msra.mxu0 0
        %764 = vmatpush.bf16.msra.mxu0 0
        %765 = vmatpush.bf16.msra.mxu0 0
        %766 = vmatpush.bf16.msra.mxu0 0
        %767 = vmatpush.bf16.msra.mxu0 0
        %768 = vmatpush.bf16.msra.mxu0 %v677
        %769 = vmatpush.bf16.msra.mxu0 %v673
        %770 = vmatmul.bf16.gmra.mxu0 %v751
        %v771 = vpop.f32.mrf.mxu0
        %v772 = vadd.f32 %v692, %v771
        %v773 = vpop.f32.mrf.mxu0
        %v774 = vadd.f32 %v697, %v773
        %775 = vmatmul.bf16.gmra.mxu0 %v754
        %v776 = vpop.f32.mrf.mxu0
        %v777 = vadd.f32 %v702, %v776
        %v778 = vpop.f32.mrf.mxu0
        %v779 = vadd.f32 %v707, %v778
        %780 = vmatmul.bf16.gmra.mxu0 %v757
        %v781 = vpop.f32.mrf.mxu0
        %v782 = vadd.f32 %v712, %v781
        %v783 = vpop.f32.mrf.mxu0
        %v784 = vadd.f32 %v717, %v783
        %785 = vmatmul.bf16.gmra.mxu0 %v760
        %v786 = vpop.f32.mrf.mxu0
        %v787 = vadd.f32 %v722, %v786
        %v788 = vpop.f32.mrf.mxu0
        %v789 = vadd.f32 %v727, %v788
        %790 = vdwg.mxu0
        %791 = vmatpush.bf16.msra.mxu0 0
        %792 = vmatpush.bf16.msra.mxu0 0
        %793 = vmatpush.bf16.msra.mxu0 0
        %794 = vmatpush.bf16.msra.mxu0 0
        %795 = vmatpush.bf16.msra.mxu0 0
        %796 = vmatpush.bf16.msra.mxu0 0
        %797 = vmatpush.bf16.msra.mxu0 %v678
        %798 = vmatpush.bf16.msra.mxu0 %v674
        %799 = vmatmul.bf16.gmra.mxu0 %v751
        %v800 = vpop.f32.mrf.mxu0
        %v801 = vadd.f32 %v692, %v800
        %v802 = vpop.f32.mrf.mxu0
        %v803 = vadd.f32 %v697, %v802
        %804 = vmatmul.bf16.gmra.mxu0 %v754
        %v805 = vpop.f32.mrf.mxu0
        %v806 = vadd.f32 %v702, %v805
        %v807 = vpop.f32.mrf.mxu0
        %v808 = vadd.f32 %v707, %v807
        %809 = vmatmul.bf16.gmra.mxu0 %v757
        %v810 = vpop.f32.mrf.mxu0
        %v811 = vadd.f32 %v712, %v810
        %v812 = vpop.f32.mrf.mxu0
        %v813 = vadd.f32 %v717, %v812
        %814 = vmatmul.bf16.gmra.mxu0 %v760
        %v815 = vpop.f32.mrf.mxu0
        %v816 = vadd.f32 %v722, %v815
        %v817 = vpop.f32.mrf.mxu0
        %v818 = vadd.f32 %v727, %v817
        %819 = vdwg.mxu0
        %820 = vmatpush.bf16.msra.mxu0 0
        %821 = vmatpush.bf16.msra.mxu0 0
        %822 = vmatpush.bf16.msra.mxu0 0
        %823 = vmatpush.bf16.msra.mxu0 0
        %824 = vmatpush.bf16.msra.mxu0 0
        %825 = vmatpush.bf16.msra.mxu0 0
        %826 = vmatpush.bf16.msra.mxu0 %v679
        %827 = vmatpush.bf16.msra.mxu0 %v675
        %828 = vmatmul.bf16.gmra.mxu0 %v751
        %v829 = vpop.f32.mrf.mxu0
        %v830 = vadd.f32 %v692, %v829
        %v831 = vpop.f32.mrf.mxu0
        %v832 = vadd.f32 %v697, %v831
        %833 = vmatmul.bf16.gmra.mxu0 %v754
        %v834 = vpop.f32.mrf.mxu0
        %v835 = vadd.f32 %v702, %v834
        %v836 = vpop.f32.mrf.mxu0
        %v837 = vadd.f32 %v707, %v836
        %838 = vmatmul.bf16.gmra.mxu0 %v757
        %v839 = vpop.f32.mrf.mxu0
        %v840 = vadd.f32 %v712, %v839
        %v841 = vpop.f32.mrf.mxu0
        %v842 = vadd.f32 %v717, %v841
        %843 = vmatmul.bf16.gmra.mxu0 %v760
        %v844 = vpop.f32.mrf.mxu0
        %v845 = vadd.f32 %v722, %v844
        %v846 = vpop.f32.mrf.mxu0
        %v847 = vadd.f32 %v727, %v846
        %848 = vdwg.mxu0
        %849 = vmatpush.bf16.msra.mxu0 0
        %850 = vmatpush.bf16.msra.mxu0 0
        %851 = vmatpush.bf16.msra.mxu0 0
        %852 = vmatpush.bf16.msra.mxu0 0
        %853 = vmatpush.bf16.msra.mxu0 0
        %854 = vmatpush.bf16.msra.mxu0 0
        %855 = vmatpush.bf16.msra.mxu0 %v680
        %856 = vmatpush.bf16.msra.mxu0 %v676
        %857 = vmatmul.bf16.gmra.mxu0 %v751
        %v858 = vpop.f32.mrf.mxu0
        %v859 = vadd.f32 %v692, %v858
        %v860 = vpop.f32.mrf.mxu0
        %v861 = vadd.f32 %v697, %v860
        %862 = vmatmul.bf16.gmra.mxu0 %v754
        %v863 = vpop.f32.mrf.mxu0
        %v864 = vadd.f32 %v702, %v863
        %v865 = vpop.f32.mrf.mxu0
        %v866 = vadd.f32 %v707, %v865
        %867 = vmatmul.bf16.gmra.mxu0 %v757
        %v868 = vpop.f32.mrf.mxu0
        %v869 = vadd.f32 %v712, %v868
        %v870 = vpop.f32.mrf.mxu0
        %v871 = vadd.f32 %v717, %v870
        %872 = vmatmul.bf16.gmra.mxu0 %v760
        %v873 = vpop.f32.mrf.mxu0
        %v874 = vadd.f32 %v722, %v873
        %v875 = vpop.f32.mrf.mxu0
        %v876 = vadd.f32 %v727, %v875
        %877 = vdwg.mxu0
        %v878 = vmax.f32 %v772, 0.0
        %v879 = vmax.f32 %v801, 0.0
        %v880 = vmax.f32 %v830, 0.0
        %v881 = vmax.f32 %v859, 0.0
        %v882 = vmax.f32 %v774, 0.0
        %v883 = vmax.f32 %v803, 0.0
        %v884 = vmax.f32 %v832, 0.0
        %v885 = vmax.f32 %v861, 0.0
        %v886 = vmax.f32 %v777, 0.0
        %v887 = vmax.f32 %v806, 0.0
        %v888 = vmax.f32 %v835, 0.0
        %v889 = vmax.f32 %v864, 0.0
        %v890 = vmax.f32 %v779, 0.0
        %v891 = vmax.f32 %v808, 0.0
        %v892 = vmax.f32 %v837, 0.0
        %v893 = vmax.f32 %v866, 0.0
        %v894 = vmax.f32 %v782, 0.0
        %v895 = vmax.f32 %v811, 0.0
        %v896 = vmax.f32 %v840, 0.0
        %v897 = vmax.f32 %v869, 0.0
        %v898 = vmax.f32 %v784, 0.0
        %v899 = vmax.f32 %v813, 0.0
        %v900 = vmax.f32 %v842, 0.0
        %v901 = vmax.f32 %v871, 0.0
        %v902 = vmax.f32 %v787, 0.0
        %v903 = vmax.f32 %v816, 0.0
        %v904 = vmax.f32 %v845, 0.0
        %v905 = vmax.f32 %v874, 0.0
        %v906 = vmax.f32 %v789, 0.0
        %v907 = vmax.f32 %v818, 0.0
        %v908 = vmax.f32 %v847, 0.0
        %v909 = vmax.f32 %v876, 0.0
        %v910 = vld [vmem:[%s5] sm:$0xf]
        %v911 = vld [vmem:[%s5 + $0x4] sm:$0xf]
        %v912 = vld [vmem:[%s5 + $0x8] sm:$0xf]
        %v913 = vld [vmem:[%s5 + $0xc] sm:$0xf]
        %v914 = vpack.c.bf16 %v882, %v878
        %v915 = vpack.c.bf16 %v883, %v879
        %v916 = vpack.c.bf16 %v884, %v880
        %v917 = vpack.c.bf16 %v885, %v881
        %v918 = vpack.c.bf16 %v890, %v886
        %v919 = vpack.c.bf16 %v891, %v887
        %v920 = vpack.c.bf16 %v892, %v888
        %v921 = vpack.c.bf16 %v893, %v889
        %v922 = vpack.c.bf16 %v898, %v894
        %v923 = vpack.c.bf16 %v899, %v895
        %v924 = vpack.c.bf16 %v900, %v896
        %v925 = vpack.c.bf16 %v901, %v897
        %v926 = vpack.c.bf16 %v906, %v902
        %v927 = vpack.c.bf16 %v907, %v903
        %v928 = vpack.c.bf16 %v908, %v904
        %v929 = vpack.c.bf16 %v909, %v905
        %v930 = vld [vmem:[%s6] sm:$0xff]
        %v931 = vld [vmem:[%s6 + $0x8] sm:$0xff]
        %v932 = vld [vmem:[%s6 + $0x10] sm:$0xff]
        %v933 = vld [vmem:[%s6 + $0x18] sm:$0xff]
        %935 = vset.pattern.permute.xlu0 0
        %936 = vperm.xlu0 %935, %v930
        %v937 = vpop.permute.xlu0 %936
        %940 = vset.pattern.permute.xlu0 0
        %941 = vperm.xlu0 %940, %v931
        %v942 = vpop.permute.xlu0 %941
        %945 = vset.pattern.permute.xlu0 0
        %946 = vperm.xlu0 %945, %v932
        %v947 = vpop.permute.xlu0 %946
        %950 = vset.pattern.permute.xlu0 0
        %951 = vperm.xlu0 %950, %v933
        %v952 = vpop.permute.xlu0 %951
        %v958 = vunpack.c.l.b16 %v910
        %v959 = vunpack.c.l.b16 %v911
        %v960 = vunpack.c.l.b16 %v912
        %v961 = vunpack.c.l.b16 %v913
        %v962 = vpack.c.b16 %v959, %v958
        %v963 = vpack.c.b16 %v961, %v960
        %vm964 = vcmask 523264
        %v966 = vsel %vm964, %v962, 0
        %v969 = vsel %vm964, %v963, 0
        %971 = vmatpush.bf16.msra.mxu0 0
        %972 = vmatpush.bf16.msra.mxu0 0
        %973 = vmatpush.bf16.msra.mxu0 0
        %974 = vmatpush.bf16.msra.mxu0 0
        %975 = vmatpush.bf16.msra.mxu0 %v926
        %976 = vmatpush.bf16.msra.mxu0 %v922
        %977 = vmatpush.bf16.msra.mxu0 %v918
        %978 = vmatpush.bf16.msra.mxu0 %v914
        %979 = vmatmul.bf16.gmra.mxu0 %v966
        %v980 = vpop.f32.mrf.mxu0
        %v981 = vadd.f32 %v937, %v980
        %v982 = vpop.f32.mrf.mxu0
        %v983 = vadd.f32 %v942, %v982
        %984 = vmatmul.bf16.gmra.mxu0 %v969
        %v985 = vpop.f32.mrf.mxu0
        %v986 = vadd.f32 %v947, %v985
        %v987 = vpop.f32.mrf.mxu0
        %v988 = vadd.f32 %v952, %v987
        %989 = vdwg.mxu0
        %990 = vmatpush.bf16.msra.mxu0 0
        %991 = vmatpush.bf16.msra.mxu0 0
        %992 = vmatpush.bf16.msra.mxu0 0
        %993 = vmatpush.bf16.msra.mxu0 0
        %994 = vmatpush.bf16.msra.mxu0 %v927
        %995 = vmatpush.bf16.msra.mxu0 %v923
        %996 = vmatpush.bf16.msra.mxu0 %v919
        %997 = vmatpush.bf16.msra.mxu0 %v915
        %998 = vmatmul.bf16.gmra.mxu0 %v966
        %v999 = vpop.f32.mrf.mxu0
        %v1000 = vadd.f32 %v937, %v999
        %v1001 = vpop.f32.mrf.mxu0
        %v1002 = vadd.f32 %v942, %v1001
        %1003 = vmatmul.bf16.gmra.mxu0 %v969
        %v1004 = vpop.f32.mrf.mxu0
        %v1005 = vadd.f32 %v947, %v1004
        %v1006 = vpop.f32.mrf.mxu0
        %v1007 = vadd.f32 %v952, %v1006
        %1008 = vdwg.mxu0
        %1009 = vmatpush.bf16.msra.mxu0 0
        %1010 = vmatpush.bf16.msra.mxu0 0
        %1011 = vmatpush.bf16.msra.mxu0 0
        %1012 = vmatpush.bf16.msra.mxu0 0
        %1013 = vmatpush.bf16.msra.mxu0 %v928
        %1014 = vmatpush.bf16.msra.mxu0 %v924
        %1015 = vmatpush.bf16.msra.mxu0 %v920
        %1016 = vmatpush.bf16.msra.mxu0 %v916
        %1017 = vmatmul.bf16.gmra.mxu0 %v966
        %v1018 = vpop.f32.mrf.mxu0
        %v1019 = vadd.f32 %v937, %v1018
        %v1020 = vpop.f32.mrf.mxu0
        %v1021 = vadd.f32 %v942, %v1020
        %1022 = vmatmul.bf16.gmra.mxu0 %v969
        %v1023 = vpop.f32.mrf.mxu0
        %v1024 = vadd.f32 %v947, %v1023
        %v1025 = vpop.f32.mrf.mxu0
        %v1026 = vadd.f32 %v952, %v1025
        %1027 = vdwg.mxu0
        %1028 = vmatpush.bf16.msra.mxu0 0
        %1029 = vmatpush.bf16.msra.mxu0 0
        %1030 = vmatpush.bf16.msra.mxu0 0
        %1031 = vmatpush.bf16.msra.mxu0 0
        %1032 = vmatpush.bf16.msra.mxu0 %v929
        %1033 = vmatpush.bf16.msra.mxu0 %v925
        %1034 = vmatpush.bf16.msra.mxu0 %v921
        %1035 = vmatpush.bf16.msra.mxu0 %v917
        %1036 = vmatmul.bf16.gmra.mxu0 %v966
        %v1037 = vpop.f32.mrf.mxu0
        %v1038 = vadd.f32 %v937, %v1037
        %v1039 = vpop.f32.mrf.mxu0
        %v1040 = vadd.f32 %v942, %v1039
        %1041 = vmatmul.bf16.gmra.mxu0 %v969
        %v1042 = vpop.f32.mrf.mxu0
        %v1043 = vadd.f32 %v947, %v1042
        %v1044 = vpop.f32.mrf.mxu0
        %v1045 = vadd.f32 %v952, %v1044
        %1046 = vdwg.mxu0
        %v1047 = vmax.f32 %v981, 0.0
        %v1048 = vmax.f32 %v1000, 0.0
        %v1049 = vmax.f32 %v1019, 0.0
        %v1050 = vmax.f32 %v1038, 0.0
        %v1051 = vmax.f32 %v983, 0.0
        %v1052 = vmax.f32 %v1002, 0.0
        %v1053 = vmax.f32 %v1021, 0.0
        %v1054 = vmax.f32 %v1040, 0.0
        %v1055 = vmax.f32 %v986, 0.0
        %v1056 = vmax.f32 %v1005, 0.0
        %v1057 = vmax.f32 %v1024, 0.0
        %v1058 = vmax.f32 %v1043, 0.0
        %v1059 = vmax.f32 %v988, 0.0
        %v1060 = vmax.f32 %v1007, 0.0
        %v1061 = vmax.f32 %v1026, 0.0
        %v1062 = vmax.f32 %v1045, 0.0
        %v1063 = vld [vmem:[%s7] sm:$0x1]
        %v1064 = vpack.c.bf16 %v1051, %v1047
        %v1065 = vpack.c.bf16 %v1052, %v1048
        %v1066 = vpack.c.bf16 %v1053, %v1049
        %v1067 = vpack.c.bf16 %v1054, %v1050
        %v1068 = vpack.c.bf16 %v1059, %v1055
        %v1069 = vpack.c.bf16 %v1060, %v1056
        %v1070 = vpack.c.bf16 %v1061, %v1057
        %v1071 = vpack.c.bf16 %v1062, %v1058
        %s1072 = sld [smem:[#allocation2]]
        %v1073 = vstv %s1072
        %v1075 = vsel %vm749, %v1063, 0
        %1077 = vmatpush.bf16.msra.mxu0 0
        %1078 = vmatpush.bf16.msra.mxu0 0
        %1079 = vmatpush.bf16.msra.mxu0 0
        %1080 = vmatpush.bf16.msra.mxu0 0
        %1081 = vmatpush.bf16.msra.mxu0 0
        %1082 = vmatpush.bf16.msra.mxu0 0
        %1083 = vmatpush.bf16.msra.mxu0 %v1068
        %1084 = vmatpush.bf16.msra.mxu0 %v1064
        %1085 = vmatmul.bf16.gmra.mxu0 %v1075
        %v1086 = vpop.f32.mrf.mxu0
        %v1087 = vadd.f32 %v1073, %v1086
        %v1088 = vpop.f32.mrf.mxu0
        %1089 = vdwg.mxu0
        %1090 = vmatpush.bf16.msra.mxu0 0
        %1091 = vmatpush.bf16.msra.mxu0 0
        %1092 = vmatpush.bf16.msra.mxu0 0
        %1093 = vmatpush.bf16.msra.mxu0 0
        %1094 = vmatpush.bf16.msra.mxu0 0
        %1095 = vmatpush.bf16.msra.mxu0 0
        %1096 = vmatpush.bf16.msra.mxu0 %v1069
        %1097 = vmatpush.bf16.msra.mxu0 %v1065
        %1098 = vmatmul.bf16.gmra.mxu0 %v1075
        %v1099 = vpop.f32.mrf.mxu0
        %v1100 = vadd.f32 %v1073, %v1099
        %v1101 = vpop.f32.mrf.mxu0
        %1102 = vdwg.mxu0
        %1103 = vmatpush.bf16.msra.mxu0 0
        %1104 = vmatpush.bf16.msra.mxu0 0
        %1105 = vmatpush.bf16.msra.mxu0 0
        %1106 = vmatpush.bf16.msra.mxu0 0
        %1107 = vmatpush.bf16.msra.mxu0 0
        %1108 = vmatpush.bf16.msra.mxu0 0
        %1109 = vmatpush.bf16.msra.mxu0 %v1070
        %1110 = vmatpush.bf16.msra.mxu0 %v1066
        %1111 = vmatmul.bf16.gmra.mxu0 %v1075
        %v1112 = vpop.f32.mrf.mxu0
        %v1113 = vadd.f32 %v1073, %v1112
        %v1114 = vpop.f32.mrf.mxu0
        %1115 = vdwg.mxu0
        %1116 = vmatpush.bf16.msra.mxu0 0
        %1117 = vmatpush.bf16.msra.mxu0 0
        %1118 = vmatpush.bf16.msra.mxu0 0
        %1119 = vmatpush.bf16.msra.mxu0 0
        %1120 = vmatpush.bf16.msra.mxu0 0
        %1121 = vmatpush.bf16.msra.mxu0 0
        %1122 = vmatpush.bf16.msra.mxu0 %v1071
        %1123 = vmatpush.bf16.msra.mxu0 %v1067
        %1124 = vmatmul.bf16.gmra.mxu0 %v1075
        %v1125 = vpop.f32.mrf.mxu0
        %v1126 = vadd.f32 %v1073, %v1125
        %v1127 = vpop.f32.mrf.mxu0
        %1128 = vdwg.mxu0
        %v1129 = vxor.u32 %v1087, 2147483648
        %v1130 = vxor.u32 %v1100, 2147483648
        %v1131 = vxor.u32 %v1113, 2147483648
        %v1132 = vxor.u32 %v1126, 2147483648
        %v1133 = vmul.f32 %v1129, 1.442695
        %v1134 = vpow.pop %v1133
        %v1135 = vmul.f32 %v1130, 1.442695
        %v1136 = vpow.pop %v1135
        %v1137 = vmul.f32 %v1131, 1.442695
        %v1138 = vpow.pop %v1137
        %v1139 = vmul.f32 %v1132, 1.442695
        %v1140 = vpow.pop %v1139
        %v1141 = vadd.f32 %v1134, 1.0
        %v1142 = vadd.f32 %v1136, 1.0
        %v1143 = vadd.f32 %v1138, 1.0
        %v1144 = vadd.f32 %v1140, 1.0
        %v1145 = vrcp.pop %v1141
        %v1146 = vmul.f32 %v1141, %v1145
        %v1147 = vsub.f32 1.0, %v1146
        %v1148 = vmul.f32 %v1145, %v1147
        %v1149 = vadd.f32 %v1145, %v1148
        %vm1150 = vweird.f32 %v1141
        %vm1151 = vweird.f32 %v1145
        %vm1152 = vmor %vm1150, %vm1151
        %v1153 = vsel %vm1152, %v1145, %v1149
        %v1154 = vand.u32 2147483647, %v1141
        %vm1155 = vcmp.eq.f32.partialorder %v1154, 8.507059e+37
        %v1156 = vand.u32 %v1141, 2147483648
        %v1157 = vor.u32 1.1754944e-38, %v1156
        %v1158 = vsel %vm1155, %v1157, %v1153
        %v1159 = vmul.f32 1.0, %v1158
        %v1160 = vrcp.pop %v1142
        %v1161 = vmul.f32 %v1142, %v1160
        %v1162 = vsub.f32 1.0, %v1161
        %v1163 = vmul.f32 %v1160, %v1162
        %v1164 = vadd.f32 %v1160, %v1163
        %vm1165 = vweird.f32 %v1142
        %vm1166 = vweird.f32 %v1160
        %vm1167 = vmor %vm1165, %vm1166
        %v1168 = vsel %vm1167, %v1160, %v1164
        %v1169 = vand.u32 2147483647, %v1142
        %vm1170 = vcmp.eq.f32.partialorder %v1169, 8.507059e+37
        %v1171 = vand.u32 %v1142, 2147483648
        %v1172 = vor.u32 1.1754944e-38, %v1171
        %v1173 = vsel %vm1170, %v1172, %v1168
        %v1174 = vmul.f32 1.0, %v1173
        %v1175 = vrcp.pop %v1143
        %v1176 = vmul.f32 %v1143, %v1175
        %v1177 = vsub.f32 1.0, %v1176
        %v1178 = vmul.f32 %v1175, %v1177
        %v1179 = vadd.f32 %v1175, %v1178
        %vm1180 = vweird.f32 %v1143
        %vm1181 = vweird.f32 %v1175
        %vm1182 = vmor %vm1180, %vm1181
        %v1183 = vsel %vm1182, %v1175, %v1179
        %v1184 = vand.u32 2147483647, %v1143
        %vm1185 = vcmp.eq.f32.partialorder %v1184, 8.507059e+37
        %v1186 = vand.u32 %v1143, 2147483648
        %v1187 = vor.u32 1.1754944e-38, %v1186
        %v1188 = vsel %vm1185, %v1187, %v1183
        %v1189 = vmul.f32 1.0, %v1188
        %v1190 = vrcp.pop %v1144
        %v1191 = vmul.f32 %v1144, %v1190
        %v1192 = vsub.f32 1.0, %v1191
        %v1193 = vmul.f32 %v1190, %v1192
        %v1194 = vadd.f32 %v1190, %v1193
        %vm1195 = vweird.f32 %v1144
        %vm1196 = vweird.f32 %v1190
        %vm1197 = vmor %vm1195, %vm1196
        %v1198 = vsel %vm1197, %v1190, %v1194
        %v1199 = vand.u32 2147483647, %v1144
        %vm1200 = vcmp.eq.f32.partialorder %v1199, 8.507059e+37
        %v1201 = vand.u32 %v1144, 2147483648
        %v1202 = vor.u32 1.1754944e-38, %v1201
        %v1203 = vsel %vm1200, %v1202, %v1198
        %v1204 = vmul.f32 1.0, %v1203
        %v1209 = vrot.slane %v1174, 7
        %v1210 = vrot.slane %v1189, 6
        %v1211 = vrot.slane %v1204, 5
        %vm1212 = vcmask 1040384
        %v1213 = vsel %vm1212, %v1159, %v1209
        %vm1214 = vcmask 1042434
        %v1215 = vsel %vm1214, %v1210, %v1211
        %vm1216 = vcmask 1041408
        %v1217 = vsel %vm1216, %v1213, %v1215
        %v1219 = vlaneseq
        %vm1220 = vcmp.ge.s32.totalorder %v1219, 0
        %vm1221 = vcmp.lt.s32.totalorder %v1219, 512
        %vm1222 = vmand %vm1220, %vm1221
        %1223 = vst.msk [vmem:[%s327] sm:$0xf] %vm1222, %v1217
        %s1224 = sand.u32 %s226, 1
        %s1225 = scalar_lea.sflag [#allocation4], %s1224
        %s1226 = sand.u32 %s226, 1
        %s1227 = smul.addr %s1226, 4
        %s1228 = scalar_lea.vmem [#allocation3], %s1227
        // Predicated region
        $region57: #{simple_ffn_forward.1} parent=55 // pred_check
          %p1229 = pneg %p236
        $region58: #{simple_ffn_forward.1} parent=55 // pred_check_branch
          %1231 = sbr.rel (%p1229) target = $region60
        $region59: #{simple_ffn_forward.1} parent=55 // pred_region
          %s1232 = smul.u32 4, %s24
          %1234 = vsyncadd %s1225, 0
          %s1235 = scalar_lea.hbm %s9, %s1232
          %s1237 = sshll.u32 %s1228, 4
          %s1238 = int_to_ptr.vmem [resolvable:$true] %s1237
          %s1239 = sshll.u32 %s1235, 4
          %s1240 = int_to_ptr.hbm [resolvable:$true] %s1239
          %1242 = dma.vmem_to_hbm [thread:$0]  %s1238, 64, %s1240, %s1225
        $region60: #{simple_ffn_forward.1} parent=55 // pred_fallthru
          _
      $region56: #{simple_ffn_forward.1} parent=5 // pred_fallthru
        _
      %p1243 = scmp.le.s32.totalorder 2, %s19
      // Predicated region
      $region61: #{simple_ffn_forward.1} parent=5 // pred_check
        %p1244 = pneg %p1243
      $region62: #{simple_ffn_forward.1} parent=5 // pred_check_branch
        %1246 = sbr.rel (%p1244) target = $region64
      $region63: #{simple_ffn_forward.1} parent=5 // pred_region
        %s1247 = ssub.s32 %s19, 2
        // Predicated region
        $region65: #{simple_ffn_forward.1} parent=63 // pred_check
          %p1248 = pneg %p242
        $region66: #{simple_ffn_forward.1} parent=63 // pred_check_branch
          %1250 = sbr.rel (%p1248) target = $region68
        $region67: #{simple_ffn_forward.1} parent=63 // pred_region
          %s1251 = sand.u32 %s227, 1
          %s1252 = scalar_lea.sflag [#allocation4], %s1251
          %s1253 = sand.u32 %s227, 1
          %s1254 = smul.addr %s1253, 4
          %s1255 = scalar_lea.vmem [#allocation3], %s1254
          %1257 = dma.done %s1252, 64
        $region68: #{simple_ffn_forward.1} parent=63 // pred_fallthru
          _
      $region64: #{simple_ffn_forward.1} parent=5 // pred_fallthru
        _
    $region6: #{simple_ffn_forward.1} parent=1 // loop_footer
      %s23 = sadd.s32 1, %s19
    $region7: #{simple_ffn_forward.1} parent=1 // loop_footer_branch
      %18 = sbr.rel target = $region3
    $region8: #{simple_ffn_forward.1} parent=1 // loop_exit
      _
    %1258 = vsyncpa [#allocation4], 1
    %s1259 = scalar_lea.sflag [#allocation4], 1
    %1260 = vsyncpa %s1259, 1

</llo_original>
